<compile_context>
chip_gen: v7x
topology: tpu7x:2x2x1
jax: 0.10.0
libtpu: 0.0.40
codegen_flags: <defaults>
</compile_context>

<pallas_src>
import functools
import math

import jax
import jax.numpy as jnp
from jax import lax
from jax.experimental import pallas as pl
from jax.experimental.pallas import tpu as pltpu

TAU = 2.0 / 3.0  # kept for the pure-JAX reference; the hard forward path is tau-invariant


def generator_kernel(x_ref, w1_ref, b1_ref, wo_ref, bo_ref, g_ref, out_ref,
                     *, cat_dims, cont_dim):
    # ---- fc1 + ReLU -------------------------------------------------------
    h = jnp.dot(x_ref[...], w1_ref[...], preferred_element_type=jnp.float32) + b1_ref[...]
    h = jnp.maximum(h, 0.0)

    # ---- single packed head matmul: [fc2 | cat head 0 | cat head 1 | ...] --
    y = jnp.dot(h, wo_ref[...], preferred_element_type=jnp.float32) + bo_ref[...]

    # gumbel noise is zero-padded over the continuous columns in the wrapper,
    # so t == y on the continuous columns and t == logits + gumbel on the rest.
    t = y + g_ref[...]

    # ---- per-head hard one-hot via masked first-argmax over (logits + g) ---
    col = lax.broadcasted_iota(jnp.int32, t.shape, 1)
    neg_inf = jnp.float32(-jnp.inf)
    big = jnp.int32(2 ** 30)
    onehot = jnp.zeros_like(t)

    off = cont_dim
    for d in cat_dims:                      # static unroll (len(cat_dims) heads)
        in_head = (col >= off) & (col < off + d)
        tm = jnp.where(in_head, t, neg_inf)
        m = jnp.max(tm, axis=-1, keepdims=True)
        # first index achieving the max (matches torch.max tie behavior)
        idx = jnp.min(jnp.where(tm == m, col, big), axis=-1, keepdims=True)
        onehot = onehot + (col == idx).astype(jnp.float32)
        off += d

    # ---- one lane-dense store of the whole (tile, out_dim) block -----------
    out_ref[...] = jnp.where(col < cont_dim, t, onehot).astype(out_ref.dtype)


def generator_forward(x, params, gumbel, *, cat_dims, cont_dim, batch_tile=None):
    w1, b1, wo, bo = params
    B, noise_dim = x.shape
    hidden_dim = w1.shape[1]
    out_dim = cont_dim + sum(cat_dims)

    # zero-pad gumbel noise over the continuous columns -> single (B, out_dim) block
    g_pad = jnp.pad(gumbel, ((0, 0), (cont_dim, 0)))

    if batch_tile is None:
        batch_tile = B if B <= 256 else 256
    assert B % batch_tile == 0, "batch must be divisible by batch_tile"
    grid = (B // batch_tile,)

    kernel = functools.partial(generator_kernel,
                               cat_dims=tuple(cat_dims), cont_dim=cont_dim)

    return pl.pallas_call(
        kernel,
        out_shape=jax.ShapeDtypeStruct((B, out_dim), jnp.float32),
        grid_spec=pltpu.PrefetchScalarGridSpec(
            num_scalar_prefetch=0,
            grid=grid,
            in_specs=[
                pl.BlockSpec((batch_tile, noise_dim), lambda i: (i, 0)),   # x
                pl.BlockSpec((noise_dim, hidden_dim), lambda i: (0, 0)),   # w1 (untiled)
                pl.BlockSpec((1, hidden_dim),         lambda i: (0, 0)),   # b1
                pl.BlockSpec((hidden_dim, out_dim),   lambda i: (0, 0)),   # packed head W
                pl.BlockSpec((1, out_dim),            lambda i: (0, 0)),   # packed head b
                pl.BlockSpec((batch_tile, out_dim),   lambda i: (i, 0)),   # padded gumbel
            ],
            out_specs=pl.BlockSpec((batch_tile, out_dim), lambda i: (i, 0)),
        ),
        compiler_params=pltpu.CompilerParams(dimension_semantics=("parallel",)),
    )(x, w1, b1, wo, bo, g_pad)


def init_params(key, noise_dim, hidden_dim, cont_dim, cat_dims):
    """PyTorch-Linear-style init (uniform +/- 1/sqrt(fan_in)); heads packed column-wise."""
    n_lin = 2 + len(cat_dims)
    ks = jax.random.split(key, 2 * n_lin)

    def linear(kw, kb, fan_in, fan_out):
        bound = 1.0 / math.sqrt(fan_in)
        w = jax.random.uniform(kw, (fan_in, fan_out), jnp.float32, -bound, bound)
        b = jax.random.uniform(kb, (1, fan_out), jnp.float32, -bound, bound)
        return w, b

    w1, b1 = linear(ks[0], ks[1], noise_dim, hidden_dim)
    w2, b2 = linear(ks[2], ks[3], hidden_dim, cont_dim)
    wcs, bcs = [], []
    for i, d in enumerate(cat_dims):
        w, b = linear(ks[4 + 2 * i], ks[5 + 2 * i], hidden_dim, d)
        wcs.append(w)
        bcs.append(b)
    # pack [continuous head | categorical heads...] into one weight / bias
    wo = jnp.concatenate([w2] + wcs, axis=1)
    bo = jnp.concatenate([b2] + bcs, axis=1)
    return (w1, b1, wo, bo)


def generator_reference(x, params, gumbel, *, cat_dims, cont_dim):
    """Pure-JAX mirror of the PyTorch module forward (for correctness checking)."""
    w1, b1, wo, bo = params
    h = jnp.maximum(x @ w1 + b1, 0.0)
    y = h @ wo + bo
    outs = [y[:, :cont_dim]]
    off = 0
    for d in cat_dims:
        z = y[:, cont_dim + off:cont_dim + off + d]
        logp = jax.nn.log_softmax(z, axis=1)
        t = (logp + gumbel[:, off:off + d]) / TAU
        y_soft = jax.nn.softmax(t, axis=-1)
        idx = jnp.argmax(y_soft, axis=-1)
        y_hard = jax.nn.one_hot(idx, d, dtype=jnp.float32)
        outs.append(y_hard - lax.stop_gradient(y_soft) + y_soft)
        off += d
    return jnp.concatenate(outs, axis=1)


if __name__ == "__main__":
    # small shapes consistent with the module
    B = 8
    noise_dim = 32
    hidden_dim = 32
    output_dims = ([6], [3, 4, 5])          # (continuous dims, categorical dims)
    cont_dim = output_dims[0][0]
    cat_dims = tuple(output_dims[1])

    key = jax.random.PRNGKey(0)
    k_x, k_p, k_g = jax.random.split(key, 3)

    x = jax.random.normal(k_x, (B, noise_dim), jnp.float32)
    params = init_params(k_p, noise_dim, hidden_dim, cont_dim, cat_dims)
    # Gumbel noise ( == -log(Exponential(1)) in the reference ), generated in plain JAX
    gumbel = jax.random.gumbel(k_g, (B, sum(cat_dims)), jnp.float32)

    out = generator_forward(x, params, gumbel, cat_dims=cat_dims, cont_dim=cont_dim)
    out = jax.block_until_ready(out)

    ref = generator_reference(x, params, gumbel, cat_dims=cat_dims, cont_dim=cont_dim)

    assert out.shape == (B, cont_dim + sum(cat_dims))
    assert bool(jnp.all(jnp.isfinite(out)))
    # kernel matches the PyTorch-semantics reference forward
    assert bool(jnp.allclose(out, ref, rtol=1e-5, atol=1e-5))
    # categorical segments are exact one-hots
    off = cont_dim
    for d in cat_dims:
        seg = out[:, off:off + d]
        assert bool(jnp.all((seg == 0.0) | (seg == 1.0)))
        assert bool(jnp.all(jnp.sum(seg, axis=1) == 1.0))
        off += d

    print("KERNEL_OK")
</pallas_src>

<mosaic_0001>
module attributes {stable_mosaic.version = 11 : i64} {
  func.func @generator_kernel(%arg0: i32, %arg1: memref<8x32xf32, #tpu.memory_space<vmem>>, %arg2: memref<32x32xf32, #tpu.memory_space<vmem>>, %arg3: memref<1x32xf32, #tpu.memory_space<vmem>>, %arg4: memref<32x18xf32, #tpu.memory_space<vmem>>, %arg5: memref<1x18xf32, #tpu.memory_space<vmem>>, %arg6: memref<8x18xf32, #tpu.memory_space<vmem>>, %arg7: memref<8x18xf32, #tpu.memory_space<vmem>>) attributes {dimension_semantics = [#tpu.dimension_semantics<parallel>], iteration_bounds = array<i64: 1>, scalar_prefetch = 0 : i64, scratch_operands = 0 : i64, tpu.core_type = #tpu.core_type<tc>, window_params = [{transform_indices = @transform_0, window_bounds = array<i64: 8, 32>}, {pipeline_mode = #tpu.pipeline_mode<synchronous>, transform_indices = @transform_1, window_bounds = array<i64: 32, 32>}, {pipeline_mode = #tpu.pipeline_mode<synchronous>, transform_indices = @transform_2, window_bounds = array<i64: 1, 32>}, {pipeline_mode = #tpu.pipeline_mode<synchronous>, transform_indices = @transform_3, window_bounds = array<i64: 32, 18>}, {pipeline_mode = #tpu.pipeline_mode<synchronous>, transform_indices = @transform_4, window_bounds = array<i64: 1, 18>}, {transform_indices = @transform_5, window_bounds = array<i64: 8, 18>}, {transform_indices = @transform_6, window_bounds = array<i64: 8, 18>}]} {
    %c0 = arith.constant 0 : index
    %c0_0 = arith.constant 0 : index
    %0 = vector.load %arg1[%c0, %c0_0] : memref<8x32xf32, #tpu.memory_space<vmem>>, vector<8x32xf32>
    %c0_1 = arith.constant 0 : index
    %c0_2 = arith.constant 0 : index
    %1 = vector.load %arg2[%c0_1, %c0_2] : memref<32x32xf32, #tpu.memory_space<vmem>>, vector<32x32xf32>
    %cst = arith.constant dense<0.000000e+00> : vector<8x32xf32>
    %2 = tpu.matmul %0, %1, %cst {dimension_numbers = #tpu.dot_dimension_numbers<[1], [0], [0], [1], [0, 0, 1, 1], [], []>} : vector<8x32xf32>, vector<32x32xf32>, vector<8x32xf32> -> vector<8x32xf32>
    %c0_3 = arith.constant 0 : index
    %c0_4 = arith.constant 0 : index
    %3 = vector.load %arg3[%c0_3, %c0_4] : memref<1x32xf32, #tpu.memory_space<vmem>>, vector<1x32xf32>
    %4 = vector.broadcast %3 : vector<1x32xf32> to vector<8x32xf32>
    %5 = arith.addf %2, %4 : vector<8x32xf32>
    %cst_5 = arith.constant 0.000000e+00 : f32
    %6 = vector.broadcast %cst_5 : f32 to vector<8x32xf32>
    %7 = arith.maximumf %5, %6 : vector<8x32xf32>
    %c0_6 = arith.constant 0 : index
    %c0_7 = arith.constant 0 : index
    %8 = vector.load %arg4[%c0_6, %c0_7] : memref<32x18xf32, #tpu.memory_space<vmem>>, vector<32x18xf32>
    %cst_8 = arith.constant dense<0.000000e+00> : vector<8x18xf32>
    %9 = tpu.matmul %7, %8, %cst_8 {dimension_numbers = #tpu.dot_dimension_numbers<[1], [0], [0], [1], [0, 0, 1, 1], [], []>} : vector<8x32xf32>, vector<32x18xf32>, vector<8x18xf32> -> vector<8x18xf32>
    %c0_9 = arith.constant 0 : index
    %c0_10 = arith.constant 0 : index
    %10 = vector.load %arg5[%c0_9, %c0_10] : memref<1x18xf32, #tpu.memory_space<vmem>>, vector<1x18xf32>
    %11 = vector.broadcast %10 : vector<1x18xf32> to vector<8x18xf32>
    %12 = arith.addf %9, %11 : vector<8x18xf32>
    %c0_11 = arith.constant 0 : index
    %c0_12 = arith.constant 0 : index
    %13 = vector.load %arg6[%c0_11, %c0_12] : memref<8x18xf32, #tpu.memory_space<vmem>>, vector<8x18xf32>
    %14 = arith.addf %12, %13 : vector<8x18xf32>
    %15 = tpu.iota {dimensions = array<i32: 1>} : vector<8x18xi32>
    %cst_13 = arith.constant 0.000000e+00 : f32
    %16 = vector.broadcast %cst_13 : f32 to vector<8x18xf32>
    %c6_i32 = arith.constant 6 : i32
    %17 = vector.broadcast %c6_i32 : i32 to vector<8x18xi32>
    %18 = arith.cmpi sge, %15, %17 : vector<8x18xi32>
    %c9_i32 = arith.constant 9 : i32
    %19 = vector.broadcast %c9_i32 : i32 to vector<8x18xi32>
    %20 = arith.cmpi slt, %15, %19 : vector<8x18xi32>
    %21 = arith.andi %18, %20 : vector<8x18xi1>
    %cst_14 = arith.constant 0xFF800000 : f32
    %22 = vector.broadcast %cst_14 : f32 to vector<8x18xf32>
    %23 = arith.select %21, %14, %22 : vector<8x18xi1>, vector<8x18xf32>
    %cst_15 = arith.constant dense<0xFF800000> : vector<8xf32>
    %24 = vector.multi_reduction <maximumf>, %23, %cst_15 [1] : vector<8x18xf32> to vector<8xf32>
    %25 = vector.shape_cast %24 : vector<8xf32> to vector<8x1xf32>
    %26 = vector.broadcast %25 : vector<8x1xf32> to vector<8x18xf32>
    %27 = arith.cmpf oeq, %23, %26 : vector<8x18xf32>
    %c1073741824_i32 = arith.constant 1073741824 : i32
    %28 = vector.broadcast %c1073741824_i32 : i32 to vector<8x18xi32>
    %29 = arith.select %27, %15, %28 : vector<8x18xi1>, vector<8x18xi32>
    %cst_16 = arith.constant dense<2147483647> : vector<8xi32>
    %30 = vector.multi_reduction <minsi>, %29, %cst_16 [1] : vector<8x18xi32> to vector<8xi32>
    %31 = vector.shape_cast %30 : vector<8xi32> to vector<8x1xi32>
    %32 = vector.broadcast %31 : vector<8x1xi32> to vector<8x18xi32>
    %33 = arith.cmpi eq, %15, %32 : vector<8x18xi32>
    %34 = arith.extui %33 : vector<8x18xi1> to vector<8x18xi32>
    %35 = arith.sitofp %34 : vector<8x18xi32> to vector<8x18xf32>
    %36 = arith.addf %16, %35 : vector<8x18xf32>
    %c9_i32_17 = arith.constant 9 : i32
    %37 = vector.broadcast %c9_i32_17 : i32 to vector<8x18xi32>
    %38 = arith.cmpi sge, %15, %37 : vector<8x18xi32>
    %c13_i32 = arith.constant 13 : i32
    %39 = vector.broadcast %c13_i32 : i32 to vector<8x18xi32>
    %40 = arith.cmpi slt, %15, %39 : vector<8x18xi32>
    %41 = arith.andi %38, %40 : vector<8x18xi1>
    %cst_18 = arith.constant 0xFF800000 : f32
    %42 = vector.broadcast %cst_18 : f32 to vector<8x18xf32>
    %43 = arith.select %41, %14, %42 : vector<8x18xi1>, vector<8x18xf32>
    %cst_19 = arith.constant dense<0xFF800000> : vector<8xf32>
    %44 = vector.multi_reduction <maximumf>, %43, %cst_19 [1] : vector<8x18xf32> to vector<8xf32>
    %45 = vector.shape_cast %44 : vector<8xf32> to vector<8x1xf32>
    %46 = vector.broadcast %45 : vector<8x1xf32> to vector<8x18xf32>
    %47 = arith.cmpf oeq, %43, %46 : vector<8x18xf32>
    %c1073741824_i32_20 = arith.constant 1073741824 : i32
    %48 = vector.broadcast %c1073741824_i32_20 : i32 to vector<8x18xi32>
    %49 = arith.select %47, %15, %48 : vector<8x18xi1>, vector<8x18xi32>
    %cst_21 = arith.constant dense<2147483647> : vector<8xi32>
    %50 = vector.multi_reduction <minsi>, %49, %cst_21 [1] : vector<8x18xi32> to vector<8xi32>
    %51 = vector.shape_cast %50 : vector<8xi32> to vector<8x1xi32>
    %52 = vector.broadcast %51 : vector<8x1xi32> to vector<8x18xi32>
    %53 = arith.cmpi eq, %15, %52 : vector<8x18xi32>
    %54 = arith.extui %53 : vector<8x18xi1> to vector<8x18xi32>
    %55 = arith.sitofp %54 : vector<8x18xi32> to vector<8x18xf32>
    %56 = arith.addf %36, %55 : vector<8x18xf32>
    %c13_i32_22 = arith.constant 13 : i32
    %57 = vector.broadcast %c13_i32_22 : i32 to vector<8x18xi32>
    %58 = arith.cmpi sge, %15, %57 : vector<8x18xi32>
    %c18_i32 = arith.constant 18 : i32
    %59 = vector.broadcast %c18_i32 : i32 to vector<8x18xi32>
    %60 = arith.cmpi slt, %15, %59 : vector<8x18xi32>
    %61 = arith.andi %58, %60 : vector<8x18xi1>
    %cst_23 = arith.constant 0xFF800000 : f32
    %62 = vector.broadcast %cst_23 : f32 to vector<8x18xf32>
    %63 = arith.select %61, %14, %62 : vector<8x18xi1>, vector<8x18xf32>
    %cst_24 = arith.constant dense<0xFF800000> : vector<8xf32>
    %64 = vector.multi_reduction <maximumf>, %63, %cst_24 [1] : vector<8x18xf32> to vector<8xf32>
    %65 = vector.shape_cast %64 : vector<8xf32> to vector<8x1xf32>
    %66 = vector.broadcast %65 : vector<8x1xf32> to vector<8x18xf32>
    %67 = arith.cmpf oeq, %63, %66 : vector<8x18xf32>
    %c1073741824_i32_25 = arith.constant 1073741824 : i32
    %68 = vector.broadcast %c1073741824_i32_25 : i32 to vector<8x18xi32>
    %69 = arith.select %67, %15, %68 : vector<8x18xi1>, vector<8x18xi32>
    %cst_26 = arith.constant dense<2147483647> : vector<8xi32>
    %70 = vector.multi_reduction <minsi>, %69, %cst_26 [1] : vector<8x18xi32> to vector<8xi32>
    %71 = vector.shape_cast %70 : vector<8xi32> to vector<8x1xi32>
    %72 = vector.broadcast %71 : vector<8x1xi32> to vector<8x18xi32>
    %73 = arith.cmpi eq, %15, %72 : vector<8x18xi32>
    %74 = arith.extui %73 : vector<8x18xi1> to vector<8x18xi32>
    %75 = arith.sitofp %74 : vector<8x18xi32> to vector<8x18xf32>
    %76 = arith.addf %56, %75 : vector<8x18xf32>
    %c6_i32_27 = arith.constant 6 : i32
    %77 = vector.broadcast %c6_i32_27 : i32 to vector<8x18xi32>
    %78 = arith.cmpi slt, %15, %77 : vector<8x18xi32>
    %79 = arith.select %78, %14, %76 : vector<8x18xi1>, vector<8x18xf32>
    %c0_28 = arith.constant 0 : index
    %c0_29 = arith.constant 0 : index
    %80 = vector.load %arg7[%c0_28, %c0_29] : memref<8x18xf32, #tpu.memory_space<vmem>>, vector<8x18xf32>
    tpu.vector_store %arg7[%c0_28, %c0_29], %79 {strides = array<i32>} : memref<8x18xf32, #tpu.memory_space<vmem>>, vector<8x18xf32>,
    return
  }
  func.func @transform_0(%arg0: i32) -> (i32, i32) {
    %c0_i32 = arith.constant 0 : i32
    %c0_i32_0 = arith.constant 0 : i32
    return %arg0, %c0_i32 : i32, i32
  }
  func.func @transform_1(%arg0: i32) -> (i32, i32) {
    %c0_i32 = arith.constant 0 : i32
    %c0_i32_0 = arith.constant 0 : i32
    %c0_i32_1 = arith.constant 0 : i32
    return %c0_i32, %c0_i32_0 : i32, i32
  }
  func.func @transform_2(%arg0: i32) -> (i32, i32) {
    %c0_i32 = arith.constant 0 : i32
    %c0_i32_0 = arith.constant 0 : i32
    %c0_i32_1 = arith.constant 0 : i32
    return %c0_i32, %c0_i32_0 : i32, i32
  }
  func.func @transform_3(%arg0: i32) -> (i32, i32) {
    %c0_i32 = arith.constant 0 : i32
    %c0_i32_0 = arith.constant 0 : i32
    %c0_i32_1 = arith.constant 0 : i32
    return %c0_i32, %c0_i32_0 : i32, i32
  }
  func.func @transform_4(%arg0: i32) -> (i32, i32) {
    %c0_i32 = arith.constant 0 : i32
    %c0_i32_0 = arith.constant 0 : i32
    %c0_i32_1 = arith.constant 0 : i32
    return %c0_i32, %c0_i32_0 : i32, i32
  }
  func.func @transform_5(%arg0: i32) -> (i32, i32) {
    %c0_i32 = arith.constant 0 : i32
    %c0_i32_0 = arith.constant 0 : i32
    return %arg0, %c0_i32 : i32, i32
  }
  func.func @transform_6(%arg0: i32) -> (i32, i32) {
    %c0_i32 = arith.constant 0 : i32
    %c0_i32_0 = arith.constant 0 : i32
    return %arg0, %c0_i32 : i32, i32
  }
}

</mosaic_0001>

<llo_original>
// kernel: tpu_custom_call.1
$region0: #{tpu_custom_call.1}
  #allocation0 [shape = 'u32[]', space=smem, size = 0x4, offset = 0x4, fixed_abs, tag = 'smem constant byte address 0x4 - core index']
  #allocation1 [shape = 'u32[144,128]{1,0:T(1,128)}', space=vmem, size = 0x12000, scoped, tag = 'internal scratch']
  %s0 = inlined_call_operand.vmem [shape: f32[8,32], index: 0, kind: input, shape index: {}]
  %s1 = inlined_call_operand.vmem [shape: f32[32,32], index: 1, kind: input, shape index: {}]
  %s2 = inlined_call_operand.vmem [shape: f32[1,32], index: 2, kind: input, shape index: {}]
  %s3 = inlined_call_operand.vmem [shape: f32[32,18], index: 3, kind: input, shape index: {}]
  %s4 = inlined_call_operand.vmem [shape: f32[1,18], index: 4, kind: input, shape index: {}]
  %s5 = inlined_call_operand.vmem [shape: f32[8,18], index: 5, kind: input, shape index: {}]
  %s6 = inlined_call_operand.hbm [shape: f32[8,18], index: 6, kind: output, shape index: {}]
  %s7 = sld [smem:[#allocation0]]
  $region34: #{tpu_custom_call.1} parent=0
    _
  %s9 = ssub.s32 1, %s7
  %s10 = scalar_select 0, %s9, %s7
  $region1: #{tpu_custom_call.1} parent=0
    #allocation2 [shape = 'u8[4096]{0}', space=vmem, size = 0x1000, scoped, tag = 'output window, operand 0, single buffered']
    #allocation3 [shape = 's32[1]{0}', space=sflag, size = 0x4, scoped, tag = 'scoped memory for tpu_custom_call.1']
    %11 = vsyncpa [#allocation3], 0
    // Predicated region
    $region2: #{tpu_custom_call.1} parent=1 // pred_check
      _
    $region3: #{tpu_custom_call.1} parent=1 // pred_check_branch
      %13 = sbr.rel (0) target = $region5
    $region4: #{tpu_custom_call.1} parent=1 // pred_region
      _
    $region5: #{tpu_custom_call.1} parent=1 // pred_fallthru
      _
    // Predicated region
    $region6: #{tpu_custom_call.1} parent=1 // pred_check
      _
    $region7: #{tpu_custom_call.1} parent=1 // pred_check_branch
      %15 = sbr.rel (0) target = $region9
    $region8: #{tpu_custom_call.1} parent=1 // pred_region
      _
    $region9: #{tpu_custom_call.1} parent=1 // pred_fallthru
      _
    // Predicated region
    $region10: #{tpu_custom_call.1} parent=1 // pred_check
      _
    $region11: #{tpu_custom_call.1} parent=1 // pred_check_branch
      %17 = sbr.rel (0) target = $region13
    $region12: #{tpu_custom_call.1} parent=1 // pred_region
      _
    $region13: #{tpu_custom_call.1} parent=1 // pred_fallthru
      _
    // Predicated region
    $region14: #{tpu_custom_call.1} parent=1 // pred_check
      _
    $region15: #{tpu_custom_call.1} parent=1 // pred_check_branch
      %19 = sbr.rel (0) target = $region17
    $region16: #{tpu_custom_call.1} parent=1 // pred_region
      _
    $region17: #{tpu_custom_call.1} parent=1 // pred_fallthru
      _
    // Predicated region
    $region18: #{tpu_custom_call.1} parent=1 // pred_check
      _
    $region19: #{tpu_custom_call.1} parent=1 // pred_check_branch
      %21 = sbr.rel (0) target = $region21
    $region20: #{tpu_custom_call.1} parent=1 // pred_region
      _
    $region21: #{tpu_custom_call.1} parent=1 // pred_fallthru
      _
    // Predicated region
    $region22: #{tpu_custom_call.1} parent=1 // pred_check
      _
    $region23: #{tpu_custom_call.1} parent=1 // pred_check_branch
      %23 = sbr.rel (0) target = $region25
    $region24: #{tpu_custom_call.1} parent=1 // pred_region
      _
    $region25: #{tpu_custom_call.1} parent=1 // pred_fallthru
      _
    %v24 = vld [vmem:[%s0] sm:$0xff]
    %v25 = vld [vmem:[%s1] sm:$0xff]
    %v26 = vld [vmem:[%s1 + $0x8] sm:$0xff]
    %v27 = vld [vmem:[%s1 + $0x10] sm:$0xff]
    %v28 = vld [vmem:[%s1 + $0x18] sm:$0xff]
    %v29 = vld [vmem:[%s2] sm:$0x1]
    %v31 = vlaneseq
    %v32 = vshrl.u32 %v31, 7
    %v33 = vsub.s32 0, %v32
    %v34 = vrot.slane %v29, %v33
    %vm36 = vcmask 261120
    %v38 = vsel %vm36, %v24, 0
    %40 = vmatprep.subr.mxu0 0.0
    %41 = vmatpush1.msra.mxu0 %v25
    %42 = vmatprep.subr.mxu0 0.0
    %43 = vmatpush1.msra.mxu0 %v26
    %44 = vmatprep.subr.mxu0 0.0
    %45 = vmatpush1.msra.mxu0 %v27
    %46 = vmatprep.subr.mxu0 0.0
    %47 = vmatpush1.msra.mxu0 %v28
    %48 = vmatprep.subr.mxu0 0.0
    %49 = vmatpush1.msra.mxu0 0.0
    %50 = vmatprep.subr.mxu0 0.0
    %51 = vmatpush1.msra.mxu0 0.0
    %52 = vmatprep.subr.mxu0 0.0
    %53 = vmatpush1.msra.mxu0 0.0
    %54 = vmatprep.subr.mxu0 0.0
    %55 = vmatpush1.msra.mxu0 0.0
    %56 = vmatprep.subr.mxu0 0.0
    %57 = vmatpush1.msra.mxu0 0.0
    %58 = vmatprep.subr.mxu0 0.0
    %59 = vmatpush1.msra.mxu0 0.0
    %60 = vmatprep.subr.mxu0 0.0
    %61 = vmatpush1.msra.mxu0 0.0
    %62 = vmatprep.subr.mxu0 0.0
    %63 = vmatpush1.msra.mxu0 0.0
    %64 = vmatprep.subr.mxu0 0.0
    %65 = vmatpush1.msra.mxu0 0.0
    %66 = vmatprep.subr.mxu0 0.0
    %67 = vmatpush1.msra.mxu0 0.0
    %68 = vmatprep.subr.mxu0 0.0
    %69 = vmatpush1.msra.mxu0 0.0
    %70 = vmatprep.subr.mxu0 0.0
    %71 = vmatpush1.msra.mxu0 0.0
    %72 = vmatprep.subr.mxu0 0.0
    %73 = vmatpush1.msra.mxu0 0.0
    %74 = vmatprep.subr.mxu0 0.0
    %75 = vmatpush1.msra.mxu0 0.0
    %76 = vmatprep.subr.mxu0 0.0
    %77 = vmatpush1.msra.mxu0 0.0
    %78 = vmatprep.subr.mxu0 0.0
    %79 = vmatpush1.msra.mxu0 0.0
    %80 = vmatprep.subr.mxu0 0.0
    %81 = vmatpush1.msra.mxu0 0.0
    %82 = vmatprep.subr.mxu0 0.0
    %83 = vmatpush1.msra.mxu0 0.0
    %84 = vmatprep.subr.mxu0 0.0
    %85 = vmatpush1.msra.mxu0 0.0
    %86 = vmatprep.subr.mxu0 0.0
    %87 = vmatpush1.msra.mxu0 0.0
    %88 = vmatprep.subr.mxu0 0.0
    %89 = vmatpush1.msra.mxu0 0.0
    %90 = vmatprep.subr.mxu0 0.0
    %91 = vmatpush1.msra.mxu0 0.0
    %92 = vmatprep.subr.mxu0 0.0
    %93 = vmatpush1.msra.mxu0 0.0
    %94 = vmatprep.subr.mxu0 0.0
    %95 = vmatpush1.msra.mxu0 0.0
    %96 = vmatprep.subr.mxu0 0.0
    %97 = vmatpush1.msra.mxu0 0.0
    %98 = vmatprep.subr.mxu0 0.0
    %99 = vmatpush1.msra.mxu0 0.0
    %100 = vmatprep.subr.mxu0 0.0
    %101 = vmatpush1.msra.mxu0 0.0
    %102 = vmatprep.subr.mxu0 0.0
    %103 = vmatpush1.msra.mxu0 0.0
    %104 = vmatprep.mubr.f32.mxu0 0.0
    %105 = vmatmul.mubr.f32.gmra.mrb[0].mxu0 %v38
    %v106 = vpop.f32.mrb[0].mxu0
    %v107 = vadd.f32 %v34, %v106
    %v108 = vpop.f32.mrb[0].mxu0
    %109 = vdwg.mxu0
    %v110 = vmax.f32 %v107, 0.0
    %v111 = vld [vmem:[%s3] sm:$0xff]
    %v112 = vld [vmem:[%s3 + $0x8] sm:$0xff]
    %v113 = vld [vmem:[%s3 + $0x10] sm:$0xff]
    %v114 = vld [vmem:[%s3 + $0x18] sm:$0xff]
    %v115 = vld [vmem:[%s4] sm:$0x1]
    %v117 = vlaneseq
    %v118 = vshrl.u32 %v117, 7
    %v119 = vsub.s32 0, %v118
    %v120 = vrot.slane %v115, %v119
    %v123 = vsel %vm36, %v110, 0
    %125 = vmatprep.subr.mxu0 0.0
    %126 = vmatpush1.msra.mxu0 %v111
    %127 = vmatprep.subr.mxu0 0.0
    %128 = vmatpush1.msra.mxu0 %v112
    %129 = vmatprep.subr.mxu0 0.0
    %130 = vmatpush1.msra.mxu0 %v113
    %131 = vmatprep.subr.mxu0 0.0
    %132 = vmatpush1.msra.mxu0 %v114
    %133 = vmatprep.subr.mxu0 0.0
    %134 = vmatpush1.msra.mxu0 0.0
    %135 = vmatprep.subr.mxu0 0.0
    %136 = vmatpush1.msra.mxu0 0.0
    %137 = vmatprep.subr.mxu0 0.0
    %138 = vmatpush1.msra.mxu0 0.0
    %139 = vmatprep.subr.mxu0 0.0
    %140 = vmatpush1.msra.mxu0 0.0
    %141 = vmatprep.subr.mxu0 0.0
    %142 = vmatpush1.msra.mxu0 0.0
    %143 = vmatprep.subr.mxu0 0.0
    %144 = vmatpush1.msra.mxu0 0.0
    %145 = vmatprep.subr.mxu0 0.0
    %146 = vmatpush1.msra.mxu0 0.0
    %147 = vmatprep.subr.mxu0 0.0
    %148 = vmatpush1.msra.mxu0 0.0
    %149 = vmatprep.subr.mxu0 0.0
    %150 = vmatpush1.msra.mxu0 0.0
    %151 = vmatprep.subr.mxu0 0.0
    %152 = vmatpush1.msra.mxu0 0.0
    %153 = vmatprep.subr.mxu0 0.0
    %154 = vmatpush1.msra.mxu0 0.0
    %155 = vmatprep.subr.mxu0 0.0
    %156 = vmatpush1.msra.mxu0 0.0
    %157 = vmatprep.subr.mxu0 0.0
    %158 = vmatpush1.msra.mxu0 0.0
    %159 = vmatprep.subr.mxu0 0.0
    %160 = vmatpush1.msra.mxu0 0.0
    %161 = vmatprep.subr.mxu0 0.0
    %162 = vmatpush1.msra.mxu0 0.0
    %163 = vmatprep.subr.mxu0 0.0
    %164 = vmatpush1.msra.mxu0 0.0
    %165 = vmatprep.subr.mxu0 0.0
    %166 = vmatpush1.msra.mxu0 0.0
    %167 = vmatprep.subr.mxu0 0.0
    %168 = vmatpush1.msra.mxu0 0.0
    %169 = vmatprep.subr.mxu0 0.0
    %170 = vmatpush1.msra.mxu0 0.0
    %171 = vmatprep.subr.mxu0 0.0
    %172 = vmatpush1.msra.mxu0 0.0
    %173 = vmatprep.subr.mxu0 0.0
    %174 = vmatpush1.msra.mxu0 0.0
    %175 = vmatprep.subr.mxu0 0.0
    %176 = vmatpush1.msra.mxu0 0.0
    %177 = vmatprep.subr.mxu0 0.0
    %178 = vmatpush1.msra.mxu0 0.0
    %179 = vmatprep.subr.mxu0 0.0
    %180 = vmatpush1.msra.mxu0 0.0
    %181 = vmatprep.subr.mxu0 0.0
    %182 = vmatpush1.msra.mxu0 0.0
    %183 = vmatprep.subr.mxu0 0.0
    %184 = vmatpush1.msra.mxu0 0.0
    %185 = vmatprep.subr.mxu0 0.0
    %186 = vmatpush1.msra.mxu0 0.0
    %187 = vmatprep.subr.mxu0 0.0
    %188 = vmatpush1.msra.mxu0 0.0
    %189 = vmatprep.mubr.f32.mxu0 0.0
    %190 = vmatmul.mubr.f32.gmra.mrb[0].mxu0 %v123
    %v191 = vpop.f32.mrb[0].mxu0
    %v192 = vadd.f32 %v120, %v191
    %v193 = vpop.f32.mrb[0].mxu0
    %194 = vdwg.mxu0
    %v195 = vld [vmem:[%s5] sm:$0xff]
    %v196 = vadd.f32 %v192, %v195
    %v197 = vlaneseq
    %v198 = vand.u32 %v197, 127
    %vm199 = vcmp.ge.s32.totalorder %v198, 6
    %vm200 = vcmp.lt.s32.totalorder %v198, 9
    %vm201 = vmand %vm199, %vm200
    %v202 = vsel %vm201, %v196, -inf
    %vm203 = vcmask 146432
    %v204 = vsel %vm203, %v202, -inf
    %205 = vmax.xlane.f32.xlu0 %v204
    %v206 = vpop.xlane.xlu0 %205
    %vm207 = vcmp.eq.f32.partialorder %v202, %v206
    %v208 = vsel %vm207, %v198, 1073741824
    %v209 = vsel %vm203, %v208, 2147483647
    %v210 = vand.u32 %v209, 65535
    %v211 = vshra.s32 %v209, 16
    %v212 = vcvt.s32.f32 %v210
    %v213 = vcvt.s32.f32 %v211
    %214 = vmin.xlane.f32.xlu0 %v213
    %v215 = vpop.xlane.xlu0 %214
    %vm216 = vcmp.eq.f32.partialorder %v213, %v215
    %v217 = vsel %vm216, %v212, inf
    %218 = vmin.xlane.f32.xlu0 %v217
    %v219 = vpop.xlane.xlu0 %218
    %v220 = vcvt.f32.s32 %v219
    %v221 = vcvt.f32.s32 %v215
    %v222 = vshll.u32 %v221, 16
    %v223 = vadd.s32 %v222, %v220
    %vm224 = vcmp.eq.s32.totalorder %v198, %v223
    %v225 = vsel %vm224, 1, 0
    %v226 = vcvt.s32.f32 %v225
    %v227 = vadd.f32 %v226, 0.0
    %vm228 = vcmp.ge.s32.totalorder %v198, 9
    %vm229 = vcmp.lt.s32.totalorder %v198, 13
    %vm230 = vmand %vm228, %vm229
    %v231 = vsel %vm230, %v196, -inf
    %v232 = vsel %vm203, %v231, -inf
    %233 = vmax.xlane.f32.xlu0 %v232
    %v234 = vpop.xlane.xlu0 %233
    %vm235 = vcmp.eq.f32.partialorder %v231, %v234
    %v236 = vsel %vm235, %v198, 1073741824
    %v237 = vsel %vm203, %v236, 2147483647
    %v238 = vand.u32 %v237, 65535
    %v239 = vshra.s32 %v237, 16
    %v240 = vcvt.s32.f32 %v238
    %v241 = vcvt.s32.f32 %v239
    %242 = vmin.xlane.f32.xlu0 %v241
    %v243 = vpop.xlane.xlu0 %242
    %vm244 = vcmp.eq.f32.partialorder %v241, %v243
    %v245 = vsel %vm244, %v240, inf
    %246 = vmin.xlane.f32.xlu0 %v245
    %v247 = vpop.xlane.xlu0 %246
    %v248 = vcvt.f32.s32 %v247
    %v249 = vcvt.f32.s32 %v243
    %v250 = vshll.u32 %v249, 16
    %v251 = vadd.s32 %v250, %v248
    %vm252 = vcmp.eq.s32.totalorder %v198, %v251
    %v253 = vsel %vm252, 1, 0
    %v254 = vcvt.s32.f32 %v253
    %v255 = vadd.f32 %v227, %v254
    %vm256 = vcmp.ge.s32.totalorder %v198, 13
    %vm257 = vcmp.lt.s32.totalorder %v198, 18
    %vm258 = vmand %vm256, %vm257
    %v259 = vsel %vm258, %v196, -inf
    %v260 = vsel %vm203, %v259, -inf
    %261 = vmax.xlane.f32.xlu0 %v260
    %v262 = vpop.xlane.xlu0 %261
    %vm263 = vcmp.eq.f32.partialorder %v259, %v262
    %v264 = vsel %vm263, %v198, 1073741824
    %v265 = vsel %vm203, %v264, 2147483647
    %v266 = vand.u32 %v265, 65535
    %v267 = vshra.s32 %v265, 16
    %v268 = vcvt.s32.f32 %v266
    %v269 = vcvt.s32.f32 %v267
    %270 = vmin.xlane.f32.xlu0 %v269
    %v271 = vpop.xlane.xlu0 %270
    %vm272 = vcmp.eq.f32.partialorder %v269, %v271
    %v273 = vsel %vm272, %v268, inf
    %274 = vmin.xlane.f32.xlu0 %v273
    %v275 = vpop.xlane.xlu0 %274
    %v276 = vcvt.f32.s32 %v275
    %v277 = vcvt.f32.s32 %v271
    %v278 = vshll.u32 %v277, 16
    %v279 = vadd.s32 %v278, %v276
    %vm280 = vcmp.eq.s32.totalorder %v198, %v279
    %v281 = vsel %vm280, 1, 0
    %v282 = vcvt.s32.f32 %v281
    %v283 = vadd.f32 %v255, %v282
    %vm284 = vcmp.lt.s32.totalorder %v198, 6
    %v285 = vsel %vm284, %v196, %v283
    %286 = vst.msk [vmem:[#allocation2] sm:$0xff] %vm203, %v285
    // Predicated region
    $region26: #{tpu_custom_call.1} parent=1 // pred_check
      _
    $region27: #{tpu_custom_call.1} parent=1 // pred_check_branch
      %288 = sbr.rel (0) target = $region29
    $region28: #{tpu_custom_call.1} parent=1 // pred_region
      %s290 = ssub.s32 128, 128
      %291 = vsyncadd [#allocation3], %s290
      %s293 = sshll.u32 [#allocation2], 4
      %s294 = int_to_ptr.vmem [resolvable:$true] %s293
      %296 = dma.vmem_to_hbm [thread:$0]  %s294, 128, %s6, [#allocation3]
    $region29: #{tpu_custom_call.1} parent=1 // pred_fallthru
      _
    // Predicated region
    $region30: #{tpu_custom_call.1} parent=1 // pred_check
      _
    $region31: #{tpu_custom_call.1} parent=1 // pred_check_branch
      %298 = sbr.rel (0) target = $region33
    $region32: #{tpu_custom_call.1} parent=1 // pred_region
      %299 = dma.done [#allocation3], 128
    $region33: #{tpu_custom_call.1} parent=1 // pred_fallthru
      _
    %300 = vsyncpa [#allocation3], 1

</llo_original>
